<compile_context>
chip_gen: v6e
topology: v6e:2x2x1
jax: 0.10.0
libtpu: 0.0.40
codegen_flags: <defaults>
</compile_context>

<pallas_src>
import jax
import jax.numpy as jnp
from jax.experimental import pallas as pl
from jax.experimental.pallas import tpu as pltpu

EPS = 1e-5
NUM_LAYERS = 3
# Per-TensorCore working-set budget: fits the 32 MiB default scoped-VMEM limit
# on every generation (v7x physical VMEM is 64 MiB).
VMEM_BUDGET_BYTES = 24 * 1024 * 1024


def trans_mlp_kernel(x_ref, wt_ref, b_ref, alpha_ref, beta_ref, o_ref):
    """Fused TransMLP: L x (TemporalFC -> spatial CustomLayerNorm -> residual).

    x_ref:     (TB, P, S)  activation block (batch tile)
    wt_ref:    (L, S, S)   stacked, pre-transposed weights (W^T), bf16, resident
    b_ref:     (L, 1, S)   stacked biases, f32, resident
    alpha_ref: (L, P, S)   stacked LN scale, pre-broadcast, f32, resident
    beta_ref:  (L, P, S)   stacked LN shift, pre-broadcast, f32, resident
    o_ref:     (TB, P, S)  output block
    """
    TB, P, S = x_ref.shape
    L = wt_ref.shape[0]

    # Residual stream stays f32 for the whole fused network.
    x = x_ref[...].astype(jnp.float32)                         # (TB, P, S)

    # L is small & static -> unrolled Python loop (full scheduler visibility).
    for l in range(L):
        # --- TemporalFC: one (TB*P, S) @ (S, S) bf16 MXU matmul, f32 accum.
        # (TB, P, S) <-> (TB*P, S) reshapes are free views when P % 8 == 0.
        y = jnp.dot(
            x.reshape(TB * P, S).astype(jnp.bfloat16),
            wt_ref[l],
            preferred_element_type=jnp.float32,
        ).reshape(TB, P, S)
        y = y + b_ref[l]                                       # (1, S) broadcast

        # --- CustomLayerNorm over the spatial axis (axis=1 of (B, P, S)).
        # Bind `centered` once and reuse it for variance + normalize
        # (one fewer full-tile VPU pass per layer than computing y - mean twice).
        mean = jnp.mean(y, axis=1, keepdims=True)              # (TB, 1, S)
        centered = y - mean
        var = jnp.mean(centered * centered, axis=1, keepdims=True)
        y = centered * jax.lax.rsqrt(var + EPS)                # rsqrt: single EUP op
        y = y * alpha_ref[l] + beta_ref[l]                     # pre-broadcast (P, S)

        # --- Residual add, stays f32.
        x = x + y

    # Single cast + store at the end.
    o_ref[...] = x.astype(o_ref.dtype)


def _choose_block_batch(B, P, S, L, budget_bytes=VMEM_BUDGET_BYTES):
    """Largest divisor TB of B whose estimated VMEM working set fits the budget.

    Estimate per grid step: 2x double-buffered input blocks + 2x output blocks
    (I/O dtype assumed f32 for the bound) + ~6 live full-tile f32 temporaries of
    the unrolled 3-layer body, plus the (double-buffered) resident parameters.
    """
    param_bytes = 2 * (L * S * S * 2            # bf16 W^T
                       + L * 1 * S * 4          # bias
                       + 2 * L * P * S * 4)     # alpha, beta (pre-broadcast)
    avail = max(budget_bytes - param_bytes, 0)
    per_batch_row = P * S * 4 * (2 + 2 + 6)     # bytes per unit of TB
    for tb in range(B, 0, -1):
        if B % tb == 0 and tb * per_batch_row <= avail:
            return tb
    return 1


@jax.jit
def trans_mlp_forward(x, w_t, b, alpha, beta):
    """Fused TransMLP forward: one pallas_call, batch-tiled 1-D parallel grid."""
    B, P, S = x.shape
    L = w_t.shape[0]
    TB = _choose_block_batch(B, P, S, L)
    grid = (B // TB,)

    # Constant index maps -> parameters stay VMEM-resident across grid steps.
    def resident(shape):
        return pl.BlockSpec(shape, lambda i: (0,) * len(shape))

    act_spec = pl.BlockSpec((TB, P, S), lambda i: (i, 0, 0))

    return pl.pallas_call(
        trans_mlp_kernel,
        out_shape=jax.ShapeDtypeStruct((B, P, S), x.dtype),
        grid=grid,
        in_specs=[
            act_spec,                  # x: tiled over batch, double-buffered
            resident((L, S, S)),       # W^T (bf16)
            resident((L, 1, S)),       # bias
            resident((L, P, S)),       # alpha (pre-broadcast)
            resident((L, P, S)),       # beta  (pre-broadcast)
        ],
        out_specs=pl.BlockSpec((TB, P, S), lambda i: (i, 0, 0)),
        compiler_params=pltpu.CompilerParams(
            dimension_semantics=("parallel",),   # megacore sharding on v7x
        ),
    )(x, w_t, b, alpha, beta)


def init_params(key, num_layers, P, S, gain=1e-8, randomize_affine=False):
    """Stacked TransMLP parameters.

    Weights are pre-transposed ONCE here (W^T) and stored in bf16 for the MXU.
    alpha / beta (module shape (1, P, 1)) are pre-broadcast to (P, S) so the
    kernel never lane-splats a width-1 operand inside the layer loop.

    Module init (MLPBlock.reset_parameters): xavier_uniform_(W, gain=1e-8),
    bias = 0, alpha = 1, beta = 0.  randomize_affine=True exercises the
    bias/alpha/beta paths in the correctness check.
    """
    bound = gain * (6.0 / (S + S)) ** 0.5
    w_t, b, alpha, beta = [], [], [], []
    for _ in range(num_layers):
        key, wk, bk, ak, gk = jax.random.split(key, 5)
        W = jax.random.uniform(wk, (S, S), jnp.float32, -bound, bound)
        w_t.append(W.T)                                        # pre-transposed
        if randomize_affine:
            b.append(jax.random.normal(bk, (1, S), jnp.float32) * 0.1)
            a_l = 1.0 + 0.1 * jax.random.normal(ak, (P, 1), jnp.float32)
            g_l = 0.1 * jax.random.normal(gk, (P, 1), jnp.float32)
        else:
            b.append(jnp.zeros((1, S), jnp.float32))
            a_l = jnp.ones((P, 1), jnp.float32)
            g_l = jnp.zeros((P, 1), jnp.float32)
        alpha.append(jnp.broadcast_to(a_l, (P, S)))
        beta.append(jnp.broadcast_to(g_l, (P, S)))
    w_t_f32 = jnp.stack(w_t)
    return {
        "w_t_f32": w_t_f32,                       # f32 master copy (reference)
        "w_t": w_t_f32.astype(jnp.bfloat16),      # bf16 copy fed to the kernel
        "b": jnp.stack(b),
        "alpha": jnp.stack(alpha),
        "beta": jnp.stack(beta),
    }


def _ln_spatial(y, alpha, beta):
    """CustomLayerNorm over axis=1, PyTorch form (sqrt + divide)."""
    mean = jnp.mean(y, axis=1, keepdims=True)
    var = jnp.mean((y - mean) ** 2, axis=1, keepdims=True)
    y = (y - mean) / jnp.sqrt(var + EPS)
    return y * alpha[None] + beta[None]


def ref_forward_f32(x, params):
    """Pure-f32 pure-JAX reference mirroring the PyTorch forward."""
    w_t, b = params["w_t_f32"], params["b"]
    alpha, beta = params["alpha"], params["beta"]
    for l in range(w_t.shape[0]):
        y = jnp.einsum("bps,st->bpt", x, w_t[l]) + b[l][None]
        x = x + _ln_spatial(y, alpha[l], beta[l])
    return x


def ref_forward_bf16_matmul(x, params):
    """Reference with the kernel's matmul numerics: bf16 MXU operands,
    f32 accumulation, f32 LayerNorm / residual."""
    w_t, b = params["w_t"], params["b"]
    alpha, beta = params["alpha"], params["beta"]
    for l in range(w_t.shape[0]):
        y = jnp.einsum("bps,st->bpt", x.astype(jnp.bfloat16), w_t[l],
                       preferred_element_type=jnp.float32) + b[l][None]
        x = x + _ln_spatial(y, alpha[l], beta[l])
    return x


if __name__ == "__main__":
    B, P, S = 2, 16, 32          # batch, in_points_dims, in_sequence_size

    key = jax.random.PRNGKey(0)
    key, xk, pk = jax.random.split(key, 3)
    x = jax.random.normal(xk, (B, P, S), jnp.float32)

    # Larger gain + random affine params so the correctness check exercises
    # every parameter path (module's own init is gain=1e-8 / 0 / 1 / 0).
    params = init_params(pk, NUM_LAYERS, P, S, gain=0.5, randomize_affine=True)

    out = trans_mlp_forward(x, params["w_t"], params["b"],
                            params["alpha"], params["beta"])
    out = jax.block_until_ready(out)
    assert out.shape == (B, P, S)

    # Numerics-matched reference (bf16 MXU operands, f32 accumulation).
    ref_matched = ref_forward_bf16_matmul(x, params)
    assert jnp.allclose(out, ref_matched, atol=1e-3, rtol=1e-3), \
        "mismatch vs bf16-matched reference"

    # Full-f32 PyTorch-equivalent reference (looser: bf16 weight quantization).
    ref_f32 = ref_forward_f32(x, params)
    assert jnp.allclose(out, ref_f32, atol=5e-2, rtol=5e-2), \
        "mismatch vs f32 reference"

    print("KERNEL_OK")
</pallas_src>

<mosaic_0001>
module attributes {stable_mosaic.version = 11 : i64} {
  func.func @trans_mlp_kernel(%arg0: i32, %arg1: memref<2x16x32xf32, #tpu.memory_space<vmem>>, %arg2: memref<3x32x32xbf16, #tpu.memory_space<vmem>>, %arg3: memref<3x1x32xf32, #tpu.memory_space<vmem>>, %arg4: memref<3x16x32xf32, #tpu.memory_space<vmem>>, %arg5: memref<3x16x32xf32, #tpu.memory_space<vmem>>, %arg6: memref<2x16x32xf32, #tpu.memory_space<vmem>>) attributes {dimension_semantics = [#tpu.dimension_semantics<parallel>], iteration_bounds = array<i64: 1>, scalar_prefetch = 0 : i64, scratch_operands = 0 : i64, tpu.core_type = #tpu.core_type<tc>, window_params = [{transform_indices = @transform_0, window_bounds = array<i64: 2, 16, 32>}, {pipeline_mode = #tpu.pipeline_mode<synchronous>, transform_indices = @transform_1, window_bounds = array<i64: 3, 32, 32>}, {pipeline_mode = #tpu.pipeline_mode<synchronous>, transform_indices = @transform_2, window_bounds = array<i64: 3, 1, 32>}, {pipeline_mode = #tpu.pipeline_mode<synchronous>, transform_indices = @transform_3, window_bounds = array<i64: 3, 16, 32>}, {pipeline_mode = #tpu.pipeline_mode<synchronous>, transform_indices = @transform_4, window_bounds = array<i64: 3, 16, 32>}, {transform_indices = @transform_5, window_bounds = array<i64: 2, 16, 32>}]} {
    %c0 = arith.constant 0 : index
    %c0_0 = arith.constant 0 : index
    %c0_1 = arith.constant 0 : index
    %0 = vector.load %arg1[%c0, %c0_0, %c0_1] : memref<2x16x32xf32, #tpu.memory_space<vmem>>, vector<2x16x32xf32>
    %1 = vector.shape_cast %0 : vector<2x16x32xf32> to vector<32x32xf32>
    %2 = arith.truncf %1 : vector<32x32xf32> to vector<32x32xbf16>
    %c0_2 = arith.constant 0 : index
    %c0_3 = arith.constant 0 : index
    %c0_4 = arith.constant 0 : index
    %3 = vector.load %arg2[%c0_2, %c0_3, %c0_4] : memref<3x32x32xbf16, #tpu.memory_space<vmem>>, vector<1x32x32xbf16>
    %4 = vector.shape_cast %3 : vector<1x32x32xbf16> to vector<32x32xbf16>
    %cst = arith.constant dense<0.000000e+00> : vector<32x32xf32>
    %5 = tpu.matmul %2, %4, %cst {dimension_numbers = #tpu.dot_dimension_numbers<[1], [0], [0], [1], [0, 0, 1, 1], [], []>} : vector<32x32xbf16>, vector<32x32xbf16>, vector<32x32xf32> -> vector<32x32xf32>
    %6 = vector.shape_cast %5 : vector<32x32xf32> to vector<2x16x32xf32>
    %c0_5 = arith.constant 0 : index
    %c0_6 = arith.constant 0 : index
    %c0_7 = arith.constant 0 : index
    %7 = vector.load %arg3[%c0_5, %c0_6, %c0_7] : memref<3x1x32xf32, #tpu.memory_space<vmem>>, vector<1x1x32xf32>
    %8 = vector.shape_cast %7 : vector<1x1x32xf32> to vector<1x32xf32>
    %9 = vector.shape_cast %8 : vector<1x32xf32> to vector<1x1x32xf32>
    %10 = vector.broadcast %9 : vector<1x1x32xf32> to vector<2x16x32xf32>
    %11 = arith.addf %6, %10 : vector<2x16x32xf32>
    %cst_8 = arith.constant dense<0.000000e+00> : vector<2x32xf32>
    %12 = vector.multi_reduction <add>, %11, %cst_8 [1] : vector<2x16x32xf32> to vector<2x32xf32>
    %13 = vector.shape_cast %12 : vector<2x32xf32> to vector<2x1x32xf32>
    %cst_9 = arith.constant 1.600000e+01 : f32
    %14 = vector.broadcast %cst_9 : f32 to vector<2x1x32xf32>
    %15 = arith.divf %13, %14 : vector<2x1x32xf32>
    %16 = vector.broadcast %15 : vector<2x1x32xf32> to vector<2x16x32xf32>
    %17 = arith.subf %11, %16 : vector<2x16x32xf32>
    %18 = arith.mulf %17, %17 : vector<2x16x32xf32>
    %cst_10 = arith.constant dense<0.000000e+00> : vector<2x32xf32>
    %19 = vector.multi_reduction <add>, %18, %cst_10 [1] : vector<2x16x32xf32> to vector<2x32xf32>
    %20 = vector.shape_cast %19 : vector<2x32xf32> to vector<2x1x32xf32>
    %cst_11 = arith.constant 1.600000e+01 : f32
    %21 = vector.broadcast %cst_11 : f32 to vector<2x1x32xf32>
    %22 = arith.divf %20, %21 : vector<2x1x32xf32>
    %cst_12 = arith.constant 9.99999974E-6 : f32
    %23 = vector.broadcast %cst_12 : f32 to vector<2x1x32xf32>
    %24 = arith.addf %22, %23 : vector<2x1x32xf32>
    %25 = math.rsqrt %24 : vector<2x1x32xf32>
    %26 = vector.broadcast %25 : vector<2x1x32xf32> to vector<2x16x32xf32>
    %27 = arith.mulf %17, %26 : vector<2x16x32xf32>
    %c0_13 = arith.constant 0 : index
    %c0_14 = arith.constant 0 : index
    %c0_15 = arith.constant 0 : index
    %28 = vector.load %arg4[%c0_13, %c0_14, %c0_15] : memref<3x16x32xf32, #tpu.memory_space<vmem>>, vector<1x16x32xf32>
    %29 = vector.shape_cast %28 : vector<1x16x32xf32> to vector<16x32xf32>
    %30 = vector.shape_cast %29 : vector<16x32xf32> to vector<1x16x32xf32>
    %31 = vector.broadcast %30 : vector<1x16x32xf32> to vector<2x16x32xf32>
    %32 = arith.mulf %27, %31 : vector<2x16x32xf32>
    %c0_16 = arith.constant 0 : index
    %c0_17 = arith.constant 0 : index
    %c0_18 = arith.constant 0 : index
    %33 = vector.load %arg5[%c0_16, %c0_17, %c0_18] : memref<3x16x32xf32, #tpu.memory_space<vmem>>, vector<1x16x32xf32>
    %34 = vector.shape_cast %33 : vector<1x16x32xf32> to vector<16x32xf32>
    %35 = vector.shape_cast %34 : vector<16x32xf32> to vector<1x16x32xf32>
    %36 = vector.broadcast %35 : vector<1x16x32xf32> to vector<2x16x32xf32>
    %37 = arith.addf %32, %36 : vector<2x16x32xf32>
    %38 = arith.addf %0, %37 : vector<2x16x32xf32>
    %39 = vector.shape_cast %38 : vector<2x16x32xf32> to vector<32x32xf32>
    %40 = arith.truncf %39 : vector<32x32xf32> to vector<32x32xbf16>
    %c1 = arith.constant 1 : index
    %c0_19 = arith.constant 0 : index
    %c0_20 = arith.constant 0 : index
    %41 = vector.load %arg2[%c1, %c0_19, %c0_20] : memref<3x32x32xbf16, #tpu.memory_space<vmem>>, vector<1x32x32xbf16>
    %42 = vector.shape_cast %41 : vector<1x32x32xbf16> to vector<32x32xbf16>
    %cst_21 = arith.constant dense<0.000000e+00> : vector<32x32xf32>
    %43 = tpu.matmul %40, %42, %cst_21 {dimension_numbers = #tpu.dot_dimension_numbers<[1], [0], [0], [1], [0, 0, 1, 1], [], []>} : vector<32x32xbf16>, vector<32x32xbf16>, vector<32x32xf32> -> vector<32x32xf32>
    %44 = vector.shape_cast %43 : vector<32x32xf32> to vector<2x16x32xf32>
    %c1_22 = arith.constant 1 : index
    %c0_23 = arith.constant 0 : index
    %c0_24 = arith.constant 0 : index
    %45 = vector.load %arg3[%c1_22, %c0_23, %c0_24] : memref<3x1x32xf32, #tpu.memory_space<vmem>>, vector<1x1x32xf32>
    %46 = vector.shape_cast %45 : vector<1x1x32xf32> to vector<1x32xf32>
    %47 = vector.shape_cast %46 : vector<1x32xf32> to vector<1x1x32xf32>
    %48 = vector.broadcast %47 : vector<1x1x32xf32> to vector<2x16x32xf32>
    %49 = arith.addf %44, %48 : vector<2x16x32xf32>
    %cst_25 = arith.constant dense<0.000000e+00> : vector<2x32xf32>
    %50 = vector.multi_reduction <add>, %49, %cst_25 [1] : vector<2x16x32xf32> to vector<2x32xf32>
    %51 = vector.shape_cast %50 : vector<2x32xf32> to vector<2x1x32xf32>
    %cst_26 = arith.constant 1.600000e+01 : f32
    %52 = vector.broadcast %cst_26 : f32 to vector<2x1x32xf32>
    %53 = arith.divf %51, %52 : vector<2x1x32xf32>
    %54 = vector.broadcast %53 : vector<2x1x32xf32> to vector<2x16x32xf32>
    %55 = arith.subf %49, %54 : vector<2x16x32xf32>
    %56 = arith.mulf %55, %55 : vector<2x16x32xf32>
    %cst_27 = arith.constant dense<0.000000e+00> : vector<2x32xf32>
    %57 = vector.multi_reduction <add>, %56, %cst_27 [1] : vector<2x16x32xf32> to vector<2x32xf32>
    %58 = vector.shape_cast %57 : vector<2x32xf32> to vector<2x1x32xf32>
    %cst_28 = arith.constant 1.600000e+01 : f32
    %59 = vector.broadcast %cst_28 : f32 to vector<2x1x32xf32>
    %60 = arith.divf %58, %59 : vector<2x1x32xf32>
    %cst_29 = arith.constant 9.99999974E-6 : f32
    %61 = vector.broadcast %cst_29 : f32 to vector<2x1x32xf32>
    %62 = arith.addf %60, %61 : vector<2x1x32xf32>
    %63 = math.rsqrt %62 : vector<2x1x32xf32>
    %64 = vector.broadcast %63 : vector<2x1x32xf32> to vector<2x16x32xf32>
    %65 = arith.mulf %55, %64 : vector<2x16x32xf32>
    %c1_30 = arith.constant 1 : index
    %c0_31 = arith.constant 0 : index
    %c0_32 = arith.constant 0 : index
    %66 = vector.load %arg4[%c1_30, %c0_31, %c0_32] : memref<3x16x32xf32, #tpu.memory_space<vmem>>, vector<1x16x32xf32>
    %67 = vector.shape_cast %66 : vector<1x16x32xf32> to vector<16x32xf32>
    %68 = vector.shape_cast %67 : vector<16x32xf32> to vector<1x16x32xf32>
    %69 = vector.broadcast %68 : vector<1x16x32xf32> to vector<2x16x32xf32>
    %70 = arith.mulf %65, %69 : vector<2x16x32xf32>
    %c1_33 = arith.constant 1 : index
    %c0_34 = arith.constant 0 : index
    %c0_35 = arith.constant 0 : index
    %71 = vector.load %arg5[%c1_33, %c0_34, %c0_35] : memref<3x16x32xf32, #tpu.memory_space<vmem>>, vector<1x16x32xf32>
    %72 = vector.shape_cast %71 : vector<1x16x32xf32> to vector<16x32xf32>
    %73 = vector.shape_cast %72 : vector<16x32xf32> to vector<1x16x32xf32>
    %74 = vector.broadcast %73 : vector<1x16x32xf32> to vector<2x16x32xf32>
    %75 = arith.addf %70, %74 : vector<2x16x32xf32>
    %76 = arith.addf %38, %75 : vector<2x16x32xf32>
    %77 = vector.shape_cast %76 : vector<2x16x32xf32> to vector<32x32xf32>
    %78 = arith.truncf %77 : vector<32x32xf32> to vector<32x32xbf16>
    %c2 = arith.constant 2 : index
    %c0_36 = arith.constant 0 : index
    %c0_37 = arith.constant 0 : index
    %79 = vector.load %arg2[%c2, %c0_36, %c0_37] : memref<3x32x32xbf16, #tpu.memory_space<vmem>>, vector<1x32x32xbf16>
    %80 = vector.shape_cast %79 : vector<1x32x32xbf16> to vector<32x32xbf16>
    %cst_38 = arith.constant dense<0.000000e+00> : vector<32x32xf32>
    %81 = tpu.matmul %78, %80, %cst_38 {dimension_numbers = #tpu.dot_dimension_numbers<[1], [0], [0], [1], [0, 0, 1, 1], [], []>} : vector<32x32xbf16>, vector<32x32xbf16>, vector<32x32xf32> -> vector<32x32xf32>
    %82 = vector.shape_cast %81 : vector<32x32xf32> to vector<2x16x32xf32>
    %c2_39 = arith.constant 2 : index
    %c0_40 = arith.constant 0 : index
    %c0_41 = arith.constant 0 : index
    %83 = vector.load %arg3[%c2_39, %c0_40, %c0_41] : memref<3x1x32xf32, #tpu.memory_space<vmem>>, vector<1x1x32xf32>
    %84 = vector.shape_cast %83 : vector<1x1x32xf32> to vector<1x32xf32>
    %85 = vector.shape_cast %84 : vector<1x32xf32> to vector<1x1x32xf32>
    %86 = vector.broadcast %85 : vector<1x1x32xf32> to vector<2x16x32xf32>
    %87 = arith.addf %82, %86 : vector<2x16x32xf32>
    %cst_42 = arith.constant dense<0.000000e+00> : vector<2x32xf32>
    %88 = vector.multi_reduction <add>, %87, %cst_42 [1] : vector<2x16x32xf32> to vector<2x32xf32>
    %89 = vector.shape_cast %88 : vector<2x32xf32> to vector<2x1x32xf32>
    %cst_43 = arith.constant 1.600000e+01 : f32
    %90 = vector.broadcast %cst_43 : f32 to vector<2x1x32xf32>
    %91 = arith.divf %89, %90 : vector<2x1x32xf32>
    %92 = vector.broadcast %91 : vector<2x1x32xf32> to vector<2x16x32xf32>
    %93 = arith.subf %87, %92 : vector<2x16x32xf32>
    %94 = arith.mulf %93, %93 : vector<2x16x32xf32>
    %cst_44 = arith.constant dense<0.000000e+00> : vector<2x32xf32>
    %95 = vector.multi_reduction <add>, %94, %cst_44 [1] : vector<2x16x32xf32> to vector<2x32xf32>
    %96 = vector.shape_cast %95 : vector<2x32xf32> to vector<2x1x32xf32>
    %cst_45 = arith.constant 1.600000e+01 : f32
    %97 = vector.broadcast %cst_45 : f32 to vector<2x1x32xf32>
    %98 = arith.divf %96, %97 : vector<2x1x32xf32>
    %cst_46 = arith.constant 9.99999974E-6 : f32
    %99 = vector.broadcast %cst_46 : f32 to vector<2x1x32xf32>
    %100 = arith.addf %98, %99 : vector<2x1x32xf32>
    %101 = math.rsqrt %100 : vector<2x1x32xf32>
    %102 = vector.broadcast %101 : vector<2x1x32xf32> to vector<2x16x32xf32>
    %103 = arith.mulf %93, %102 : vector<2x16x32xf32>
    %c2_47 = arith.constant 2 : index
    %c0_48 = arith.constant 0 : index
    %c0_49 = arith.constant 0 : index
    %104 = vector.load %arg4[%c2_47, %c0_48, %c0_49] : memref<3x16x32xf32, #tpu.memory_space<vmem>>, vector<1x16x32xf32>
    %105 = vector.shape_cast %104 : vector<1x16x32xf32> to vector<16x32xf32>
    %106 = vector.shape_cast %105 : vector<16x32xf32> to vector<1x16x32xf32>
    %107 = vector.broadcast %106 : vector<1x16x32xf32> to vector<2x16x32xf32>
    %108 = arith.mulf %103, %107 : vector<2x16x32xf32>
    %c2_50 = arith.constant 2 : index
    %c0_51 = arith.constant 0 : index
    %c0_52 = arith.constant 0 : index
    %109 = vector.load %arg5[%c2_50, %c0_51, %c0_52] : memref<3x16x32xf32, #tpu.memory_space<vmem>>, vector<1x16x32xf32>
    %110 = vector.shape_cast %109 : vector<1x16x32xf32> to vector<16x32xf32>
    %111 = vector.shape_cast %110 : vector<16x32xf32> to vector<1x16x32xf32>
    %112 = vector.broadcast %111 : vector<1x16x32xf32> to vector<2x16x32xf32>
    %113 = arith.addf %108, %112 : vector<2x16x32xf32>
    %114 = arith.addf %76, %113 : vector<2x16x32xf32>
    %c0_53 = arith.constant 0 : index
    %c0_54 = arith.constant 0 : index
    %c0_55 = arith.constant 0 : index
    %115 = vector.load %arg6[%c0_53, %c0_54, %c0_55] : memref<2x16x32xf32, #tpu.memory_space<vmem>>, vector<2x16x32xf32>
    tpu.vector_store %arg6[%c0_53, %c0_54, %c0_55], %114 {strides = array<i32>} : memref<2x16x32xf32, #tpu.memory_space<vmem>>, vector<2x16x32xf32>,
    return
  }
  func.func @transform_0(%arg0: i32) -> (i32, i32, i32) {
    %c0_i32 = arith.constant 0 : i32
    %c0_i32_0 = arith.constant 0 : i32
    %c0_i32_1 = arith.constant 0 : i32
    return %arg0, %c0_i32, %c0_i32_0 : i32, i32, i32
  }
  func.func @transform_1(%arg0: i32) -> (i32, i32, i32) {
    %c0_i32 = arith.constant 0 : i32
    %c0_i32_0 = arith.constant 0 : i32
    %c0_i32_1 = arith.constant 0 : i32
    %c0_i32_2 = arith.constant 0 : i32
    return %c0_i32, %c0_i32_0, %c0_i32_1 : i32, i32, i32
  }
  func.func @transform_2(%arg0: i32) -> (i32, i32, i32) {
    %c0_i32 = arith.constant 0 : i32
    %c0_i32_0 = arith.constant 0 : i32
    %c0_i32_1 = arith.constant 0 : i32
    %c0_i32_2 = arith.constant 0 : i32
    return %c0_i32, %c0_i32_0, %c0_i32_1 : i32, i32, i32
  }
  func.func @transform_3(%arg0: i32) -> (i32, i32, i32) {
    %c0_i32 = arith.constant 0 : i32
    %c0_i32_0 = arith.constant 0 : i32
    %c0_i32_1 = arith.constant 0 : i32
    %c0_i32_2 = arith.constant 0 : i32
    return %c0_i32, %c0_i32_0, %c0_i32_1 : i32, i32, i32
  }
  func.func @transform_4(%arg0: i32) -> (i32, i32, i32) {
    %c0_i32 = arith.constant 0 : i32
    %c0_i32_0 = arith.constant 0 : i32
    %c0_i32_1 = arith.constant 0 : i32
    %c0_i32_2 = arith.constant 0 : i32
    return %c0_i32, %c0_i32_0, %c0_i32_1 : i32, i32, i32
  }
  func.func @transform_5(%arg0: i32) -> (i32, i32, i32) {
    %c0_i32 = arith.constant 0 : i32
    %c0_i32_0 = arith.constant 0 : i32
    %c0_i32_1 = arith.constant 0 : i32
    return %arg0, %c0_i32, %c0_i32_0 : i32, i32, i32
  }
}

</mosaic_0001>

<llo_original>
// kernel: trans_mlp_forward.1
$region0: #{trans_mlp_forward.1}
  #allocation0 [shape = 'u32[]', space=smem, size = 0x4, offset = 0x4, fixed_abs, tag = 'smem constant byte address 0x4 - core index']
  #allocation1 [shape = 'u32[144,128]{1,0:T(1,128)}', space=vmem, size = 0x12000, scoped, tag = 'internal scratch']
  %s0 = inlined_call_operand.hbm [shape: f32[2,16,32], index: 0, kind: input, shape index: {}]
  %s1 = inlined_call_operand.hbm [shape: bf16[3,32,32], index: 1, kind: input, shape index: {}]
  %s2 = inlined_call_operand.vmem [shape: f32[3,1,32], index: 2, kind: input, shape index: {}]
  %s3 = inlined_call_operand.hbm [shape: f32[3,16,32], index: 3, kind: input, shape index: {}]
  %s4 = inlined_call_operand.hbm [shape: f32[3,16,32], index: 4, kind: input, shape index: {}]
  %s5 = inlined_call_operand.hbm [shape: f32[2,16,32], index: 5, kind: output, shape index: {}]
  %s6 = sld [smem:[#allocation0]]
  $region46: #{trans_mlp_forward.1} parent=0
    _
  %s8 = ssub.s32 1, %s6
  %s9 = scalar_select 0, %s8, %s6
  $region1: #{trans_mlp_forward.1} parent=0
    #allocation2 [shape = 'u8[16384]{0}', space=vmem, size = 0x4000, scoped, tag = 'input window, operand 0, single buffered']
    #allocation3 [shape = 's32[1]{0}', space=sflag, size = 0x4, scoped, tag = 'scoped memory for trans_mlp_forward.1']
    #allocation4 [shape = 's32[1]{0}', space=sflag, size = 0x4, scoped, tag = 'scoped memory for trans_mlp_forward.1']
    #allocation5 [shape = 'u8[24576]{0}', space=vmem, size = 0x6000, scoped, tag = 'input window, operand 1, single buffered']
    #allocation6 [shape = 's32[1]{0}', space=sflag, size = 0x4, scoped, tag = 'scoped memory for trans_mlp_forward.1']
    #allocation7 [shape = 'u8[24576]{0}', space=vmem, size = 0x6000, scoped, tag = 'input window, operand 3, single buffered']
    #allocation8 [shape = 'u8[24576]{0}', space=vmem, size = 0x6000, scoped, tag = 'input window, operand 4, single buffered']
    #allocation9 [shape = 's32[1]{0}', space=sflag, size = 0x4, scoped, tag = 'scoped memory for trans_mlp_forward.1']
    #allocation10 [shape = 'u8[16384]{0}', space=vmem, size = 0x4000, scoped, tag = 'output window, operand 0, single buffered']
    %10 = vsyncpa [#allocation3], 0
    %11 = vsyncpa [#allocation6], 0
    %12 = vsyncpa [#allocation9], 0
    %13 = vsyncpa [#allocation4], 0
    // Predicated region
    $region2: #{trans_mlp_forward.1} parent=1 // pred_check
      _
    $region3: #{trans_mlp_forward.1} parent=1 // pred_check_branch
      %15 = sbr.rel (0) target = $region5
    $region4: #{trans_mlp_forward.1} parent=1 // pred_region
      %s17 = ssub.s32 512, 512
      %18 = vsyncadd [#allocation3], %s17
      %s19 = sshll.u32 [#allocation2], 4
      %s20 = int_to_ptr.vmem [resolvable:$true] %s19
      %25 = dma.hbm_to_vmem [thread:$0]  %s0, 512, %s20, [#allocation3], 128, 128, 8
    $region5: #{trans_mlp_forward.1} parent=1 // pred_fallthru
      _
    // Predicated region
    $region6: #{trans_mlp_forward.1} parent=1 // pred_check
      _
    $region7: #{trans_mlp_forward.1} parent=1 // pred_check_branch
      %27 = sbr.rel (0) target = $region9
    $region8: #{trans_mlp_forward.1} parent=1 // pred_region
      %s29 = ssub.s32 768, 768
      %30 = vsyncadd [#allocation6], %s29
      %s31 = sshll.u32 [#allocation5], 4
      %s32 = int_to_ptr.vmem [resolvable:$true] %s31
      %37 = dma.hbm_to_vmem [thread:$0]  %s1, 768, %s32, [#allocation6], 64, 64, 4
    $region9: #{trans_mlp_forward.1} parent=1 // pred_fallthru
      _
    // Predicated region
    $region10: #{trans_mlp_forward.1} parent=1 // pred_check
      _
    $region11: #{trans_mlp_forward.1} parent=1 // pred_check_branch
      %39 = sbr.rel (0) target = $region13
    $region12: #{trans_mlp_forward.1} parent=1 // pred_region
      _
    $region13: #{trans_mlp_forward.1} parent=1 // pred_fallthru
      _
    // Predicated region
    $region14: #{trans_mlp_forward.1} parent=1 // pred_check
      _
    $region15: #{trans_mlp_forward.1} parent=1 // pred_check_branch
      %41 = sbr.rel (0) target = $region17
    $region16: #{trans_mlp_forward.1} parent=1 // pred_region
      %s43 = ssub.s32 768, 768
      %44 = vsyncadd [#allocation6], %s43
      %s45 = sshll.u32 [#allocation7], 4
      %s46 = int_to_ptr.vmem [resolvable:$true] %s45
      %51 = dma.hbm_to_vmem [thread:$0]  %s3, 768, %s46, [#allocation6], 128, 128, 8
    $region17: #{trans_mlp_forward.1} parent=1 // pred_fallthru
      _
    // Predicated region
    $region18: #{trans_mlp_forward.1} parent=1 // pred_check
      _
    $region19: #{trans_mlp_forward.1} parent=1 // pred_check_branch
      %53 = sbr.rel (0) target = $region21
    $region20: #{trans_mlp_forward.1} parent=1 // pred_region
      %s55 = ssub.s32 768, 768
      %56 = vsyncadd [#allocation9], %s55
      %s57 = sshll.u32 [#allocation8], 4
      %s58 = int_to_ptr.vmem [resolvable:$true] %s57
      %63 = dma.hbm_to_vmem [thread:$0]  %s4, 768, %s58, [#allocation9], 128, 128, 8
    $region21: #{trans_mlp_forward.1} parent=1 // pred_fallthru
      _
    // Predicated region
    $region22: #{trans_mlp_forward.1} parent=1 // pred_check
      _
    $region23: #{trans_mlp_forward.1} parent=1 // pred_check_branch
      %65 = sbr.rel (0) target = $region25
    $region24: #{trans_mlp_forward.1} parent=1 // pred_region
      %66 = dma.done [#allocation3], 512
    $region25: #{trans_mlp_forward.1} parent=1 // pred_fallthru
      _
    // Predicated region
    $region26: #{trans_mlp_forward.1} parent=1 // pred_check
      _
    $region27: #{trans_mlp_forward.1} parent=1 // pred_check_branch
      %68 = sbr.rel (0) target = $region29
    $region28: #{trans_mlp_forward.1} parent=1 // pred_region
      %69 = dma.done [#allocation6], 768
    $region29: #{trans_mlp_forward.1} parent=1 // pred_fallthru
      _
    // Predicated region
    $region30: #{trans_mlp_forward.1} parent=1 // pred_check
      _
    $region31: #{trans_mlp_forward.1} parent=1 // pred_check_branch
      %71 = sbr.rel (0) target = $region33
    $region32: #{trans_mlp_forward.1} parent=1 // pred_region
      %72 = dma.done [#allocation6], 768
    $region33: #{trans_mlp_forward.1} parent=1 // pred_fallthru
      _
    // Predicated region
    $region34: #{trans_mlp_forward.1} parent=1 // pred_check
      _
    $region35: #{trans_mlp_forward.1} parent=1 // pred_check_branch
      %74 = sbr.rel (0) target = $region37
    $region36: #{trans_mlp_forward.1} parent=1 // pred_region
      %75 = dma.done [#allocation9], 768
    $region37: #{trans_mlp_forward.1} parent=1 // pred_fallthru
      _
    %v77 = vld [vmem:[#allocation2] sm:$0xff]
    %v78 = vld [vmem:[#allocation2 + $0x8] sm:$0xff]
    %v79 = vld [vmem:[#allocation2 + $0x10] sm:$0xff]
    %v80 = vld [vmem:[#allocation2 + $0x18] sm:$0xff]
    %v81 = vpack.c.bf16 %v78, %v77
    %v82 = vpack.c.bf16 %v80, %v79
    %v83 = vld [vmem:[#allocation5] sm:$0xf]
    %v84 = vld [vmem:[#allocation5 + $0x4] sm:$0xf]
    %v85 = vld [vmem:[#allocation5 + $0x8] sm:$0xf]
    %v86 = vld [vmem:[#allocation5 + $0xc] sm:$0xf]
    %v91 = vunpack.c.l.b16 %v83
    %v92 = vunpack.c.l.b16 %v84
    %v93 = vunpack.c.l.b16 %v85
    %v94 = vunpack.c.l.b16 %v86
    %v95 = vpack.c.b16 %v92, %v91
    %v96 = vpack.c.b16 %v94, %v93
    %vm99 = vcmask 261120
    %v101 = vsel %vm99, %v81, 0
    %v104 = vsel %vm99, %v82, 0
    %106 = vmatprep.subr.bf16.mxu0 0
    %107 = vmatpush1.bf16.msra.mxu0 0
    %108 = vmatprep.subr.bf16.mxu0 0
    %109 = vmatpush1.bf16.msra.mxu0 0
    %110 = vmatprep.subr.bf16.mxu0 0
    %111 = vmatpush1.bf16.msra.mxu0 0
    %112 = vmatprep.subr.bf16.mxu0 0
    %113 = vmatpush1.bf16.msra.mxu0 0
    %114 = vmatprep.subr.bf16.mxu0 0
    %115 = vmatpush1.bf16.msra.mxu0 0
    %116 = vmatprep.subr.bf16.mxu0 0
    %117 = vmatpush1.bf16.msra.mxu0 0
    %118 = vmatprep.subr.bf16.mxu0 0
    %119 = vmatpush1.bf16.msra.mxu0 %v96
    %120 = vmatprep.subr.bf16.mxu0 0
    %121 = vmatpush1.bf16.msra.mxu0 %v95
    %122 = vmatprep.subr.bf16.mxu0 0
    %123 = vmatpush2.bf16.msra.mxu0 0
    %124 = vmatprep.subr.bf16.mxu0 0
    %125 = vmatpush2.bf16.msra.mxu0 0
    %126 = vmatprep.subr.bf16.mxu0 0
    %127 = vmatpush2.bf16.msra.mxu0 0
    %128 = vmatprep.subr.bf16.mxu0 0
    %129 = vmatpush2.bf16.msra.mxu0 0
    %130 = vmatprep.subr.bf16.mxu0 0
    %131 = vmatpush2.bf16.msra.mxu0 0
    %132 = vmatprep.subr.bf16.mxu0 0
    %133 = vmatpush2.bf16.msra.mxu0 0
    %134 = vmatprep.subr.bf16.mxu0 0
    %135 = vmatpush2.bf16.msra.mxu0 0
    %136 = vmatprep.subr.bf16.mxu0 0
    %137 = vmatpush2.bf16.msra.mxu0 0
    %138 = vmatprep.mubr.bf16.mxu0 0
    %139 = vmatmul.mubr.bf16.gmra.mxu0 %v101
    %v140 = vpop.f32.mrf.mxu0
    %v141 = vadd.f32 0.0, %v140
    %v142 = vpop.f32.mrf.mxu0
    %v143 = vpop.f32.mrf.mxu0
    %v144 = vadd.f32 0.0, %v143
    %v145 = vpop.f32.mrf.mxu0
    %146 = vmatprep.mubr.bf16.mxu0 0
    %147 = vmatmul.mubr.bf16.gmra.mxu0 %v104
    %v148 = vpop.f32.mrf.mxu0
    %v149 = vadd.f32 0.0, %v148
    %v150 = vpop.f32.mrf.mxu0
    %v151 = vpop.f32.mrf.mxu0
    %v152 = vadd.f32 0.0, %v151
    %v153 = vpop.f32.mrf.mxu0
    %154 = vdwg.mxu0
    %v155 = vld [vmem:[%s2] sm:$0x1]
    %v157 = vlaneseq
    %v158 = vshrl.u32 %v157, 7
    %v159 = vsub.s32 0, %v158
    %v160 = vrot.slane %v155, %v159
    %v162 = vadd.f32 %v141, %v160
    %v163 = vadd.f32 %v144, %v160
    %v164 = vadd.f32 %v149, %v160
    %v165 = vadd.f32 %v152, %v160
    %v166 = vsel %vm99, %v162, 0.0
    %v167 = vsel %vm99, %v163, 0.0
    %v168 = vadd.f32 %v166, %v167
    %v169 = vrot.slane %v168, 4
    %v170 = vadd.f32 %v168, %v169
    %v171 = vrot.slane %v170, 2
    %v172 = vadd.f32 %v170, %v171
    %v173 = vrot.slane %v172, 1
    %v174 = vadd.f32 %v172, %v173
    %v175 = vsel %vm99, %v164, 0.0
    %v176 = vsel %vm99, %v165, 0.0
    %v177 = vadd.f32 %v175, %v176
    %v178 = vrot.slane %v177, 4
    %v179 = vadd.f32 %v177, %v178
    %v180 = vrot.slane %v179, 2
    %v181 = vadd.f32 %v179, %v180
    %v182 = vrot.slane %v181, 1
    %v183 = vadd.f32 %v181, %v182
    %v184 = vrcp.pop 16.0
    %v185 = vmul.f32 %v174, %v184
    %v186 = vmul.f32 %v183, %v184
    %v187 = vsub.f32 %v162, %v185
    %v188 = vsub.f32 %v163, %v185
    %v189 = vsub.f32 %v164, %v186
    %v190 = vsub.f32 %v165, %v186
    %v191 = vmul.f32 %v187, %v187
    %v192 = vmul.f32 %v188, %v188
    %v193 = vmul.f32 %v189, %v189
    %v194 = vmul.f32 %v190, %v190
    %v195 = vsel %vm99, %v191, 0.0
    %v196 = vsel %vm99, %v192, 0.0
    %v197 = vadd.f32 %v195, %v196
    %v198 = vrot.slane %v197, 4
    %v199 = vadd.f32 %v197, %v198
    %v200 = vrot.slane %v199, 2
    %v201 = vadd.f32 %v199, %v200
    %v202 = vrot.slane %v201, 1
    %v203 = vadd.f32 %v201, %v202
    %v204 = vsel %vm99, %v193, 0.0
    %v205 = vsel %vm99, %v194, 0.0
    %v206 = vadd.f32 %v204, %v205
    %v207 = vrot.slane %v206, 4
    %v208 = vadd.f32 %v206, %v207
    %v209 = vrot.slane %v208, 2
    %v210 = vadd.f32 %v208, %v209
    %v211 = vrot.slane %v210, 1
    %v212 = vadd.f32 %v210, %v211
    %v213 = vmul.f32 %v203, %v184
    %v214 = vmul.f32 %v212, %v184
    %v215 = vadd.f32 %v213, 1e-05
    %v216 = vadd.f32 %v214, 1e-05
    %v217 = vrsqrt.pop %v215
    %v218 = vrsqrt.pop %v216
    %v219 = vmul.f32 %v187, %v217
    %v220 = vmul.f32 %v188, %v217
    %v221 = vmul.f32 %v189, %v218
    %v222 = vmul.f32 %v190, %v218
    %v223 = vld [vmem:[#allocation7] sm:$0xff]
    %v224 = vld [vmem:[#allocation7 + $0x8] sm:$0xff]
    %v225 = vmul.f32 %v219, %v223
    %v226 = vmul.f32 %v220, %v224
    %v227 = vmul.f32 %v221, %v223
    %v228 = vmul.f32 %v222, %v224
    %v229 = vld [vmem:[#allocation8] sm:$0xff]
    %v230 = vld [vmem:[#allocation8 + $0x8] sm:$0xff]
    %v231 = vadd.f32 %v225, %v229
    %v232 = vadd.f32 %v226, %v230
    %v233 = vadd.f32 %v227, %v229
    %v234 = vadd.f32 %v228, %v230
    %v235 = vadd.f32 %v77, %v231
    %v236 = vadd.f32 %v78, %v232
    %v237 = vadd.f32 %v79, %v233
    %v238 = vadd.f32 %v80, %v234
    %v239 = vpack.c.bf16 %v236, %v235
    %v240 = vpack.c.bf16 %v238, %v237
    %s241 = scalar_lea.vmem [#allocation5], 16
    %v242 = vld [vmem:[%s241] sm:$0xf]
    %v243 = vld [vmem:[%s241 + $0x4] sm:$0xf]
    %v244 = vld [vmem:[%s241 + $0x8] sm:$0xf]
    %v245 = vld [vmem:[%s241 + $0xc] sm:$0xf]
    %v250 = vunpack.c.l.b16 %v242
    %v251 = vunpack.c.l.b16 %v243
    %v252 = vunpack.c.l.b16 %v244
    %v253 = vunpack.c.l.b16 %v245
    %v254 = vpack.c.b16 %v251, %v250
    %v255 = vpack.c.b16 %v253, %v252
    %v259 = vsel %vm99, %v239, 0
    %v262 = vsel %vm99, %v240, 0
    %264 = vmatprep.subr.bf16.mxu0 0
    %265 = vmatpush1.bf16.msra.mxu0 0
    %266 = vmatprep.subr.bf16.mxu0 0
    %267 = vmatpush1.bf16.msra.mxu0 0
    %268 = vmatprep.subr.bf16.mxu0 0
    %269 = vmatpush1.bf16.msra.mxu0 0
    %270 = vmatprep.subr.bf16.mxu0 0
    %271 = vmatpush1.bf16.msra.mxu0 0
    %272 = vmatprep.subr.bf16.mxu0 0
    %273 = vmatpush1.bf16.msra.mxu0 0
    %274 = vmatprep.subr.bf16.mxu0 0
    %275 = vmatpush1.bf16.msra.mxu0 0
    %276 = vmatprep.subr.bf16.mxu0 0
    %277 = vmatpush1.bf16.msra.mxu0 %v255
    %278 = vmatprep.subr.bf16.mxu0 0
    %279 = vmatpush1.bf16.msra.mxu0 %v254
    %280 = vmatprep.subr.bf16.mxu0 0
    %281 = vmatpush2.bf16.msra.mxu0 0
    %282 = vmatprep.subr.bf16.mxu0 0
    %283 = vmatpush2.bf16.msra.mxu0 0
    %284 = vmatprep.subr.bf16.mxu0 0
    %285 = vmatpush2.bf16.msra.mxu0 0
    %286 = vmatprep.subr.bf16.mxu0 0
    %287 = vmatpush2.bf16.msra.mxu0 0
    %288 = vmatprep.subr.bf16.mxu0 0
    %289 = vmatpush2.bf16.msra.mxu0 0
    %290 = vmatprep.subr.bf16.mxu0 0
    %291 = vmatpush2.bf16.msra.mxu0 0
    %292 = vmatprep.subr.bf16.mxu0 0
    %293 = vmatpush2.bf16.msra.mxu0 0
    %294 = vmatprep.subr.bf16.mxu0 0
    %295 = vmatpush2.bf16.msra.mxu0 0
    %296 = vmatprep.mubr.bf16.mxu0 0
    %297 = vmatmul.mubr.bf16.gmra.mxu0 %v259
    %v298 = vpop.f32.mrf.mxu0
    %v299 = vadd.f32 0.0, %v298
    %v300 = vpop.f32.mrf.mxu0
    %v301 = vpop.f32.mrf.mxu0
    %v302 = vadd.f32 0.0, %v301
    %v303 = vpop.f32.mrf.mxu0
    %304 = vmatprep.mubr.bf16.mxu0 0
    %305 = vmatmul.mubr.bf16.gmra.mxu0 %v262
    %v306 = vpop.f32.mrf.mxu0
    %v307 = vadd.f32 0.0, %v306
    %v308 = vpop.f32.mrf.mxu0
    %v309 = vpop.f32.mrf.mxu0
    %v310 = vadd.f32 0.0, %v309
    %v311 = vpop.f32.mrf.mxu0
    %312 = vdwg.mxu0
    %s313 = scalar_lea.vmem %s2, 1
    %v314 = vld [vmem:[%s313] sm:$0x1]
    %v316 = vlaneseq
    %v317 = vshrl.u32 %v316, 7
    %v318 = vsub.s32 0, %v317
    %v319 = vrot.slane %v314, %v318
    %v321 = vadd.f32 %v299, %v319
    %v322 = vadd.f32 %v302, %v319
    %v323 = vadd.f32 %v307, %v319
    %v324 = vadd.f32 %v310, %v319
    %v325 = vsel %vm99, %v321, 0.0
    %v326 = vsel %vm99, %v322, 0.0
    %v327 = vadd.f32 %v325, %v326
    %v328 = vrot.slane %v327, 4
    %v329 = vadd.f32 %v327, %v328
    %v330 = vrot.slane %v329, 2
    %v331 = vadd.f32 %v329, %v330
    %v332 = vrot.slane %v331, 1
    %v333 = vadd.f32 %v331, %v332
    %v334 = vsel %vm99, %v323, 0.0
    %v335 = vsel %vm99, %v324, 0.0
    %v336 = vadd.f32 %v334, %v335
    %v337 = vrot.slane %v336, 4
    %v338 = vadd.f32 %v336, %v337
    %v339 = vrot.slane %v338, 2
    %v340 = vadd.f32 %v338, %v339
    %v341 = vrot.slane %v340, 1
    %v342 = vadd.f32 %v340, %v341
    %v343 = vmul.f32 %v333, %v184
    %v344 = vmul.f32 %v342, %v184
    %v345 = vsub.f32 %v321, %v343
    %v346 = vsub.f32 %v322, %v343
    %v347 = vsub.f32 %v323, %v344
    %v348 = vsub.f32 %v324, %v344
    %v349 = vmul.f32 %v345, %v345
    %v350 = vmul.f32 %v346, %v346
    %v351 = vmul.f32 %v347, %v347
    %v352 = vmul.f32 %v348, %v348
    %v353 = vsel %vm99, %v349, 0.0
    %v354 = vsel %vm99, %v350, 0.0
    %v355 = vadd.f32 %v353, %v354
    %v356 = vrot.slane %v355, 4
    %v357 = vadd.f32 %v355, %v356
    %v358 = vrot.slane %v357, 2
    %v359 = vadd.f32 %v357, %v358
    %v360 = vrot.slane %v359, 1
    %v361 = vadd.f32 %v359, %v360
    %v362 = vsel %vm99, %v351, 0.0
    %v363 = vsel %vm99, %v352, 0.0
    %v364 = vadd.f32 %v362, %v363
    %v365 = vrot.slane %v364, 4
    %v366 = vadd.f32 %v364, %v365
    %v367 = vrot.slane %v366, 2
    %v368 = vadd.f32 %v366, %v367
    %v369 = vrot.slane %v368, 1
    %v370 = vadd.f32 %v368, %v369
    %v371 = vmul.f32 %v361, %v184
    %v372 = vmul.f32 %v370, %v184
    %v373 = vadd.f32 %v371, 1e-05
    %v374 = vadd.f32 %v372, 1e-05
    %v375 = vrsqrt.pop %v373
    %v376 = vrsqrt.pop %v374
    %v377 = vmul.f32 %v345, %v375
    %v378 = vmul.f32 %v346, %v375
    %v379 = vmul.f32 %v347, %v376
    %v380 = vmul.f32 %v348, %v376
    %s381 = scalar_lea.vmem [#allocation7], 16
    %v382 = vld [vmem:[%s381] sm:$0xff]
    %v383 = vld [vmem:[%s381 + $0x8] sm:$0xff]
    %v384 = vmul.f32 %v377, %v382
    %v385 = vmul.f32 %v378, %v383
    %v386 = vmul.f32 %v379, %v382
    %v387 = vmul.f32 %v380, %v383
    %s388 = scalar_lea.vmem [#allocation8], 16
    %v389 = vld [vmem:[%s388] sm:$0xff]
    %v390 = vld [vmem:[%s388 + $0x8] sm:$0xff]
    %v391 = vadd.f32 %v384, %v389
    %v392 = vadd.f32 %v385, %v390
    %v393 = vadd.f32 %v386, %v389
    %v394 = vadd.f32 %v387, %v390
    %v395 = vadd.f32 %v235, %v391
    %v396 = vadd.f32 %v236, %v392
    %v397 = vadd.f32 %v237, %v393
    %v398 = vadd.f32 %v238, %v394
    %v399 = vpack.c.bf16 %v396, %v395
    %v400 = vpack.c.bf16 %v398, %v397
    %s401 = scalar_lea.vmem [#allocation5], 32
    %v402 = vld [vmem:[%s401] sm:$0xf]
    %v403 = vld [vmem:[%s401 + $0x4] sm:$0xf]
    %v404 = vld [vmem:[%s401 + $0x8] sm:$0xf]
    %v405 = vld [vmem:[%s401 + $0xc] sm:$0xf]
    %v410 = vunpack.c.l.b16 %v402
    %v411 = vunpack.c.l.b16 %v403
    %v412 = vunpack.c.l.b16 %v404
    %v413 = vunpack.c.l.b16 %v405
    %v414 = vpack.c.b16 %v411, %v410
    %v415 = vpack.c.b16 %v413, %v412
    %v419 = vsel %vm99, %v399, 0
    %v422 = vsel %vm99, %v400, 0
    %424 = vmatprep.subr.bf16.mxu0 0
    %425 = vmatpush1.bf16.msra.mxu0 0
    %426 = vmatprep.subr.bf16.mxu0 0
    %427 = vmatpush1.bf16.msra.mxu0 0
    %428 = vmatprep.subr.bf16.mxu0 0
    %429 = vmatpush1.bf16.msra.mxu0 0
    %430 = vmatprep.subr.bf16.mxu0 0
    %431 = vmatpush1.bf16.msra.mxu0 0
    %432 = vmatprep.subr.bf16.mxu0 0
    %433 = vmatpush1.bf16.msra.mxu0 0
    %434 = vmatprep.subr.bf16.mxu0 0
    %435 = vmatpush1.bf16.msra.mxu0 0
    %436 = vmatprep.subr.bf16.mxu0 0
    %437 = vmatpush1.bf16.msra.mxu0 %v415
    %438 = vmatprep.subr.bf16.mxu0 0
    %439 = vmatpush1.bf16.msra.mxu0 %v414
    %440 = vmatprep.subr.bf16.mxu0 0
    %441 = vmatpush2.bf16.msra.mxu0 0
    %442 = vmatprep.subr.bf16.mxu0 0
    %443 = vmatpush2.bf16.msra.mxu0 0
    %444 = vmatprep.subr.bf16.mxu0 0
    %445 = vmatpush2.bf16.msra.mxu0 0
    %446 = vmatprep.subr.bf16.mxu0 0
    %447 = vmatpush2.bf16.msra.mxu0 0
    %448 = vmatprep.subr.bf16.mxu0 0
    %449 = vmatpush2.bf16.msra.mxu0 0
    %450 = vmatprep.subr.bf16.mxu0 0
    %451 = vmatpush2.bf16.msra.mxu0 0
    %452 = vmatprep.subr.bf16.mxu0 0
    %453 = vmatpush2.bf16.msra.mxu0 0
    %454 = vmatprep.subr.bf16.mxu0 0
    %455 = vmatpush2.bf16.msra.mxu0 0
    %456 = vmatprep.mubr.bf16.mxu0 0
    %457 = vmatmul.mubr.bf16.gmra.mxu0 %v419
    %v458 = vpop.f32.mrf.mxu0
    %v459 = vadd.f32 0.0, %v458
    %v460 = vpop.f32.mrf.mxu0
    %v461 = vpop.f32.mrf.mxu0
    %v462 = vadd.f32 0.0, %v461
    %v463 = vpop.f32.mrf.mxu0
    %464 = vmatprep.mubr.bf16.mxu0 0
    %465 = vmatmul.mubr.bf16.gmra.mxu0 %v422
    %v466 = vpop.f32.mrf.mxu0
    %v467 = vadd.f32 0.0, %v466
    %v468 = vpop.f32.mrf.mxu0
    %v469 = vpop.f32.mrf.mxu0
    %v470 = vadd.f32 0.0, %v469
    %v471 = vpop.f32.mrf.mxu0
    %472 = vdwg.mxu0
    %s473 = scalar_lea.vmem %s2, 2
    %v474 = vld [vmem:[%s473] sm:$0x1]
    %v476 = vlaneseq
    %v477 = vshrl.u32 %v476, 7
    %v478 = vsub.s32 0, %v477
    %v479 = vrot.slane %v474, %v478
    %v481 = vadd.f32 %v459, %v479
    %v482 = vadd.f32 %v462, %v479
    %v483 = vadd.f32 %v467, %v479
    %v484 = vadd.f32 %v470, %v479
    %v485 = vsel %vm99, %v481, 0.0
    %v486 = vsel %vm99, %v482, 0.0
    %v487 = vadd.f32 %v485, %v486
    %v488 = vrot.slane %v487, 4
    %v489 = vadd.f32 %v487, %v488
    %v490 = vrot.slane %v489, 2
    %v491 = vadd.f32 %v489, %v490
    %v492 = vrot.slane %v491, 1
    %v493 = vadd.f32 %v491, %v492
    %v494 = vsel %vm99, %v483, 0.0
    %v495 = vsel %vm99, %v484, 0.0
    %v496 = vadd.f32 %v494, %v495
    %v497 = vrot.slane %v496, 4
    %v498 = vadd.f32 %v496, %v497
    %v499 = vrot.slane %v498, 2
    %v500 = vadd.f32 %v498, %v499
    %v501 = vrot.slane %v500, 1
    %v502 = vadd.f32 %v500, %v501
    %v503 = vmul.f32 %v493, %v184
    %v504 = vmul.f32 %v502, %v184
    %v505 = vsub.f32 %v481, %v503
    %v506 = vsub.f32 %v482, %v503
    %v507 = vsub.f32 %v483, %v504
    %v508 = vsub.f32 %v484, %v504
    %v509 = vmul.f32 %v505, %v505
    %v510 = vmul.f32 %v506, %v506
    %v511 = vmul.f32 %v507, %v507
    %v512 = vmul.f32 %v508, %v508
    %v513 = vsel %vm99, %v509, 0.0
    %v514 = vsel %vm99, %v510, 0.0
    %v515 = vadd.f32 %v513, %v514
    %v516 = vrot.slane %v515, 4
    %v517 = vadd.f32 %v515, %v516
    %v518 = vrot.slane %v517, 2
    %v519 = vadd.f32 %v517, %v518
    %v520 = vrot.slane %v519, 1
    %v521 = vadd.f32 %v519, %v520
    %v522 = vsel %vm99, %v511, 0.0
    %v523 = vsel %vm99, %v512, 0.0
    %v524 = vadd.f32 %v522, %v523
    %v525 = vrot.slane %v524, 4
    %v526 = vadd.f32 %v524, %v525
    %v527 = vrot.slane %v526, 2
    %v528 = vadd.f32 %v526, %v527
    %v529 = vrot.slane %v528, 1
    %v530 = vadd.f32 %v528, %v529
    %v531 = vmul.f32 %v521, %v184
    %v532 = vmul.f32 %v530, %v184
    %v533 = vadd.f32 %v531, 1e-05
    %v534 = vadd.f32 %v532, 1e-05
    %v535 = vrsqrt.pop %v533
    %v536 = vrsqrt.pop %v534
    %v537 = vmul.f32 %v505, %v535
    %v538 = vmul.f32 %v506, %v535
    %v539 = vmul.f32 %v507, %v536
    %v540 = vmul.f32 %v508, %v536
    %s541 = scalar_lea.vmem [#allocation7], 32
    %v542 = vld [vmem:[%s541] sm:$0xff]
    %v543 = vld [vmem:[%s541 + $0x8] sm:$0xff]
    %v544 = vmul.f32 %v537, %v542
    %v545 = vmul.f32 %v538, %v543
    %v546 = vmul.f32 %v539, %v542
    %v547 = vmul.f32 %v540, %v543
    %s548 = scalar_lea.vmem [#allocation8], 32
    %v549 = vld [vmem:[%s548] sm:$0xff]
    %v550 = vld [vmem:[%s548 + $0x8] sm:$0xff]
    %v551 = vadd.f32 %v544, %v549
    %v552 = vadd.f32 %v545, %v550
    %v553 = vadd.f32 %v546, %v549
    %v554 = vadd.f32 %v547, %v550
    %v555 = vadd.f32 %v395, %v551
    %v556 = vadd.f32 %v396, %v552
    %v557 = vadd.f32 %v397, %v553
    %v558 = vadd.f32 %v398, %v554
    %559 = vst.msk [vmem:[#allocation10] sm:$0xff] %vm99, %v555
    %560 = vst.msk [vmem:[#allocation10 + $0x8] sm:$0xff] %vm99, %v556
    %561 = vst.msk [vmem:[#allocation10 + $0x10] sm:$0xff] %vm99, %v557
    %562 = vst.msk [vmem:[#allocation10 + $0x18] sm:$0xff] %vm99, %v558
    // Predicated region
    $region38: #{trans_mlp_forward.1} parent=1 // pred_check
      _
    $region39: #{trans_mlp_forward.1} parent=1 // pred_check_branch
      %564 = sbr.rel (0) target = $region41
    $region40: #{trans_mlp_forward.1} parent=1 // pred_region
      %s566 = ssub.s32 512, 512
      %567 = vsyncadd [#allocation4], %s566
      %s568 = sshll.u32 [#allocation10], 4
      %s569 = int_to_ptr.vmem [resolvable:$true] %s568
      %574 = dma.vmem_to_hbm [thread:$0]  %s569, 512, %s5, [#allocation4], 128, 128, 8
    $region41: #{trans_mlp_forward.1} parent=1 // pred_fallthru
      _
    // Predicated region
    $region42: #{trans_mlp_forward.1} parent=1 // pred_check
      _
    $region43: #{trans_mlp_forward.1} parent=1 // pred_check_branch
      %576 = sbr.rel (0) target = $region45
    $region44: #{trans_mlp_forward.1} parent=1 // pred_region
      %577 = dma.done [#allocation4], 512
    $region45: #{trans_mlp_forward.1} parent=1 // pred_fallthru
      _
    %578 = vsyncpa [#allocation3], 1
    %579 = vsyncpa [#allocation6], 1
    %580 = vsyncpa [#allocation9], 1
    %581 = vsyncpa [#allocation4], 1

</llo_original>
